<compile_context>
chip_gen: v7x
topology: tpu7x:2x2x1
jax: 0.10.0
libtpu: 0.0.40
codegen_flags: <defaults>
</compile_context>

<pallas_src>
import functools

import jax
import jax.numpy as jnp
from jax import lax
from jax.experimental import pallas as pl
from jax.experimental.pallas import tpu as pltpu

_NEG_LARGE = -1e30          # "minus infinity" that stays finite under f32 math
_INPUT_VMEM_BUDGET = 16 * 1024 * 1024   # double-buffered streamed-input bytes
_VMEM_LIMIT_BYTES = 32 << 20            # safe on v5e/v6e/v7x (phys >= 64 MiB)


# --------------------------------------------------------------------------
# Kernels
# --------------------------------------------------------------------------
def _soft_ce_kernel(logits_ref, targets_ref, loss_ref,
                    m_sc, l_sc, st_sc, stx_sc,
                    *, n_rows, n_cols, block_b, block_c,
                    has_batch_tail, has_class_tail):
    """Soft targets.  grid = (batch tiles, class tiles); class axis = reduction."""
    i = pl.program_id(0)
    k = pl.program_id(1)
    nk = pl.num_programs(1)

    @pl.when(k == 0)
    def _():
        m_sc[...] = jnp.full_like(m_sc, _NEG_LARGE)
        l_sc[...] = jnp.zeros_like(l_sc)
        st_sc[...] = jnp.zeros_like(st_sc)
        stx_sc[...] = jnp.zeros_like(stx_sc)

    x = logits_ref[...].astype(jnp.float32)    # (tb, tc)
    t = targets_ref[...].astype(jnp.float32)   # (tb, tc)

    if has_class_tail:
        # Local lane iota vs scalar (C - k*block_c): interior blocks see an
        # all-true mask; for aligned C this branch is never traced.
        n_valid = n_cols - k * block_c
        col_ok = lax.broadcasted_iota(jnp.int32, x.shape, 1) < n_valid
        x = jnp.where(col_ok, x, _NEG_LARGE)
        t = jnp.where(col_ok, t, 0.0)

    # Online LSE + fused loss sums:  loss = (m + log l) * sum(t) - sum(t*x)
    m_prev = m_sc[...]
    m_new = jnp.maximum(m_prev, jnp.max(x, axis=1, keepdims=True))
    alpha = jnp.exp(m_prev - m_new)
    l_sc[...] = alpha * l_sc[...] + jnp.sum(jnp.exp(x - m_new), axis=1, keepdims=True)
    st_sc[...] += jnp.sum(t, axis=1, keepdims=True)
    stx_sc[...] += jnp.sum(t * x, axis=1, keepdims=True)
    m_sc[...] = m_new

    @pl.when(k == nk - 1)
    def _():
        loss = (m_sc[...] + jnp.log(l_sc[...])) * st_sc[...] - stx_sc[...]
        if has_batch_tail:
            # Un-padded batch tail: garbage in out-of-bounds rows is confined
            # to those rows; zero them (select does not propagate NaN).
            row = i * block_b + lax.broadcasted_iota(jnp.int32, loss.shape, 0)
            loss = jnp.where(row < n_rows, loss, 0.0)
        loss_ref[...] = loss


def _hard_ce_kernel(logits_ref, labels_ref, loss_ref,
                    m_sc, l_sc, xy_sc,
                    *, n_rows, n_cols, block_b, block_c,
                    has_batch_tail, has_class_tail):
    """Integer class-id targets; no dense one-hot -> only logits stream from HBM."""
    # TODO(synk): out-of-range labels (y<0 or y>=C) contribute 0 like "no hit";
    # PyTorch would error — no ignore_index support here.
    i = pl.program_id(0)
    k = pl.program_id(1)
    nk = pl.num_programs(1)

    @pl.when(k == 0)
    def _():
        m_sc[...] = jnp.full_like(m_sc, _NEG_LARGE)
        l_sc[...] = jnp.zeros_like(l_sc)
        xy_sc[...] = jnp.zeros_like(xy_sc)

    x = logits_ref[...].astype(jnp.float32)                    # (tb, tc)
    local_col = lax.broadcasted_iota(jnp.int32, x.shape, 1)    # constant, hoisted

    if has_class_tail:
        x = jnp.where(local_col < (n_cols - k * block_c), x, _NEG_LARGE)

    m_prev = m_sc[...]
    m_new = jnp.maximum(m_prev, jnp.max(x, axis=1, keepdims=True))
    alpha = jnp.exp(m_prev - m_new)
    l_sc[...] = alpha * l_sc[...] + jnp.sum(jnp.exp(x - m_new), axis=1, keepdims=True)

    # Gather x[b, y_b]: per-row scalar shift of the label column + one
    # broadcast compare against the constant lane iota (cheap VPU work).
    y_local = labels_ref[...] - k * block_c                    # (tb, 1) int32
    hit = local_col == y_local
    xy_sc[...] += jnp.sum(jnp.where(hit, x, 0.0), axis=1, keepdims=True)
    m_sc[...] = m_new

    @pl.when(k == nk - 1)
    def _():
        loss = m_sc[...] + jnp.log(l_sc[...]) - xy_sc[...]
        if has_batch_tail:
            row = i * block_b + lax.broadcasted_iota(jnp.int32, loss.shape, 0)
            loss = jnp.where(row < n_rows, loss, 0.0)
        loss_ref[...] = loss


# --------------------------------------------------------------------------
# Tile selection
# --------------------------------------------------------------------------
def _pick_block_b(B, requested):
    if requested is not None:
        bb = max(1, int(requested))
        bb = ((bb + 7) // 8) * 8
        return B if bb >= B else bb
    if B <= 8:
        return B                      # full-dim block (always legal)
    # Keep nb >= 2 for small B so the "parallel" batch axis can shard across
    # v7x's two TensorCores; cap at 256 to keep accumulator-column vreg
    # pressure low (prefer widening block_c for DMA amortization).
    bb = min(256, 8 * ((((B + 1) // 2) + 7) // 8))
    return B if bb >= B else bb


def _pick_block_c(C, block_b, stream_bytes_per_elem, requested):
    if requested is not None:
        bc = min(int(requested), C)
        if bc < C:
            bc = (bc // 128) * 128
            if bc == 0:
                bc = C
        return bc
    # Largest lane-aligned class tile whose double-buffered streamed inputs fit
    # the budget: hard path streams half the bytes -> ~2x wider tile for free.
    cap = _INPUT_VMEM_BUDGET // (2 * block_b * max(1, stream_bytes_per_elem))
    cap = max(128, (cap // 128) * 128)
    return C if C <= cap else cap


# --------------------------------------------------------------------------
# Wrapper
# --------------------------------------------------------------------------
def soft_cross_entropy(logits, targets, reduction="none", *,
                       block_b=None, block_c=None):
    """JAX/Pallas equivalent of PyTorch `soft_cross_entropy`.

    logits:  (B, C) float (f32 or bf16)
    targets: (B, C) float soft targets, or (B,) int class ids
    reduction: "none" -> (B,) per-sample loss; "mean" -> scalar
    """
    logits = jnp.asarray(logits)
    targets = jnp.asarray(targets)

    hard = targets.ndim == 1  # integer class ids (PyTorch one_hot branch)

    if not hard:
        if targets.ndim == 3 and targets.shape[1] == 1:
            targets = jnp.squeeze(targets, axis=1)
        if targets.shape != logits.shape:
            raise ValueError(
                f"Target shape ({targets.shape}) must match logits shape "
                f"({logits.shape})!")

    B, C = logits.shape
    l_bytes = jnp.dtype(logits.dtype).itemsize
    stream_bytes = l_bytes if hard else l_bytes + jnp.dtype(targets.dtype).itemsize

    bb = _pick_block_b(B, block_b)
    bc = _pick_block_c(C, bb, stream_bytes, block_c)

    nb = pl.cdiv(B, bb)
    nk = pl.cdiv(C, bc)
    has_batch_tail = (B % bb) != 0
    has_class_tail = (C % bc) != 0

    logits_spec = pl.BlockSpec((bb, bc), lambda i, k: (i, k))
    out_spec = pl.BlockSpec((bb, 1), lambda i, k: (i, 0))
    cparams = pltpu.CompilerParams(
        dimension_semantics=("parallel", "arbitrary"),
        vmem_limit_bytes=_VMEM_LIMIT_BYTES)
    cost = pl.CostEstimate(
        flops=6 * B * C,
        transcendentals=B * C,
        bytes_accessed=B * C * stream_bytes + (B * 4 if hard else 0) + B * 4)

    if hard:
        labels = targets.astype(jnp.int32).reshape(B, 1)
        kernel = functools.partial(
            _hard_ce_kernel, n_rows=B, n_cols=C, block_b=bb, block_c=bc,
            has_batch_tail=has_batch_tail, has_class_tail=has_class_tail)
        loss2d = pl.pallas_call(
            kernel,
            out_shape=jax.ShapeDtypeStruct((B, 1), jnp.float32),
            grid_spec=pltpu.PrefetchScalarGridSpec(
                num_scalar_prefetch=0,
                grid=(nb, nk),
                in_specs=[logits_spec,
                          pl.BlockSpec((bb, 1), lambda i, k: (i, 0))],
                out_specs=out_spec,
                scratch_shapes=[pltpu.VMEM((bb, 1), jnp.float32)] * 3,
            ),
            compiler_params=cparams,
            cost_estimate=cost,
        )(logits, labels)
    else:
        targets_spec = pl.BlockSpec((bb, bc), lambda i, k: (i, k))
        kernel = functools.partial(
            _soft_ce_kernel, n_rows=B, n_cols=C, block_b=bb, block_c=bc,
            has_batch_tail=has_batch_tail, has_class_tail=has_class_tail)
        loss2d = pl.pallas_call(
            kernel,
            out_shape=jax.ShapeDtypeStruct((B, 1), jnp.float32),
            grid_spec=pltpu.PrefetchScalarGridSpec(
                num_scalar_prefetch=0,
                grid=(nb, nk),
                in_specs=[logits_spec, targets_spec],
                out_specs=out_spec,
                scratch_shapes=[pltpu.VMEM((bb, 1), jnp.float32)] * 4,
            ),
            compiler_params=cparams,
            cost_estimate=cost,
        )(logits, targets)

    loss = loss2d[:, 0]
    if reduction == "mean":
        # O(B) epilogue -- negligible vs the O(B*C) kernel, keeps tiling clean.
        return jnp.mean(loss)
    return loss


class SoftCrossEntropyLoss:
    """Mirror of the PyTorch module: holds the reduction mode, no parameters."""

    def __init__(self, reduction="none"):
        self.reduction = reduction

    def __call__(self, logits, targets):
        return soft_cross_entropy(logits, targets, reduction=self.reduction)


# --------------------------------------------------------------------------
# Reference + self-test
# --------------------------------------------------------------------------
def _reference(logits, targets, reduction="none"):
    if targets.ndim == 1:
        targets = jax.nn.one_hot(targets, logits.shape[-1], dtype=jnp.float32)
    logsm = jax.nn.log_softmax(logits.astype(jnp.float32), axis=1)
    loss = jnp.sum(-targets.astype(jnp.float32) * logsm, axis=1)
    if reduction == "mean":
        return jnp.mean(loss)
    return loss


if __name__ == "__main__":
    key = jax.random.PRNGKey(0)
    k1, k2, k3, k4, k5 = jax.random.split(key, 5)

    # ---- small case (single full-dim block) --------------------------------
    B, C = 8, 32
    logits = jax.random.normal(k1, (B, C), dtype=jnp.float32) * 2.0
    raw = jax.random.uniform(k2, (B, C), dtype=jnp.float32)
    targets = raw / jnp.sum(raw, axis=1, keepdims=True)

    loss_none = jax.block_until_ready(
        SoftCrossEntropyLoss(reduction="none")(logits, targets))
    assert loss_none.shape == (B,)
    assert jnp.allclose(loss_none, _reference(logits, targets, "none"),
                        atol=1e-5, rtol=1e-5)

    loss_mean = jax.block_until_ready(
        SoftCrossEntropyLoss(reduction="mean")(logits, targets))
    assert jnp.allclose(loss_mean, _reference(logits, targets, "mean"),
                        atol=1e-5, rtol=1e-5)

    hard = jnp.arange(B, dtype=jnp.int32) % C
    loss_hard = jax.block_until_ready(
        SoftCrossEntropyLoss(reduction="none")(logits, hard))
    assert jnp.allclose(loss_hard, _reference(logits, hard, "none"),
                        atol=1e-5, rtol=1e-5)

    # ---- ragged B and C, forced small tiles: un-padded batch tail + class
    #      tail mask + multi-step online-LSE accumulator ----------------------
    B2, C2 = 100, 300
    logits2 = jax.random.normal(k3, (B2, C2), dtype=jnp.float32) * 3.0
    raw2 = jax.random.uniform(k4, (B2, C2), dtype=jnp.float32)
    targets2 = raw2 / jnp.sum(raw2, axis=1, keepdims=True)
    hard2 = jax.random.randint(k5, (B2,), 0, C2, dtype=jnp.int32)

    ln2 = jax.block_until_ready(
        soft_cross_entropy(logits2, targets2, "none", block_b=32, block_c=128))
    assert ln2.shape == (B2,)
    assert jnp.allclose(ln2, _reference(logits2, targets2, "none"),
                        atol=1e-4, rtol=1e-5)

    lm2 = jax.block_until_ready(
        soft_cross_entropy(logits2, targets2, "mean", block_b=32, block_c=128))
    assert jnp.allclose(lm2, _reference(logits2, targets2, "mean"),
                        atol=1e-4, rtol=1e-5)

    lh2 = jax.block_until_ready(
        soft_cross_entropy(logits2, hard2, "none", block_b=32, block_c=128))
    assert jnp.allclose(lh2, _reference(logits2, hard2, "none"),
                        atol=1e-4, rtol=1e-5)

    # ---- default (auto) tiling with a ragged batch tail (locks in the
    #      "no wrapper pad" change) ------------------------------------------
    ln3 = jax.block_until_ready(soft_cross_entropy(logits2, targets2, "none"))
    assert jnp.allclose(ln3, _reference(logits2, targets2, "none"),
                        atol=1e-4, rtol=1e-5)
    lh3 = jax.block_until_ready(soft_cross_entropy(logits2, hard2, "none"))
    assert jnp.allclose(lh3, _reference(logits2, hard2, "none"),
                        atol=1e-4, rtol=1e-5)

    print("KERNEL_OK")
</pallas_src>

<mosaic_0001>
module attributes {stable_mosaic.version = 11 : i64} {
  func.func @_soft_ce_kernel(%arg0: i32, %arg1: i32, %arg2: memref<8x32xf32, #tpu.memory_space<vmem>>, %arg3: memref<8x32xf32, #tpu.memory_space<vmem>>, %arg4: memref<8x1xf32, #tpu.memory_space<vmem>>, %arg5: memref<8x1xf32, #tpu.memory_space<vmem>>, %arg6: memref<8x1xf32, #tpu.memory_space<vmem>>, %arg7: memref<8x1xf32, #tpu.memory_space<vmem>>, %arg8: memref<8x1xf32, #tpu.memory_space<vmem>>) attributes {dimension_semantics = [#tpu.dimension_semantics<parallel>, #tpu.dimension_semantics<arbitrary>], iteration_bounds = array<i64: 1, 1>, scalar_prefetch = 0 : i64, scratch_operands = 4 : i64, tpu.core_type = #tpu.core_type<tc>, window_params = [{transform_indices = @transform_0, window_bounds = array<i64: 8, 32>}, {transform_indices = @transform_1, window_bounds = array<i64: 8, 32>}, {transform_indices = @transform_2, window_bounds = array<i64: 8, 1>}]} {
    %c0_i32 = arith.constant 0 : i32
    %0 = arith.cmpi eq, %arg1, %c0_i32 : i32
    %1 = arith.extui %0 : i1 to i32
    %c0_i32_0 = arith.constant 0 : i32
    %2 = arith.cmpi ne, %1, %c0_i32_0 : i32
    scf.if %2 {
      %cst_25 = arith.constant -1.000000e+30 : f32
      %35 = vector.broadcast %cst_25 : f32 to vector<8x1xf32>
      %c0_26 = arith.constant 0 : index
      %c0_27 = arith.constant 0 : index
      %36 = vector.load %arg5[%c0_26, %c0_27] : memref<8x1xf32, #tpu.memory_space<vmem>>, vector<8x1xf32>
      tpu.vector_store %arg5[%c0_26, %c0_27], %35 {strides = array<i32>} : memref<8x1xf32, #tpu.memory_space<vmem>>, vector<8x1xf32>,
      %cst_28 = arith.constant 0.000000e+00 : f32
      %37 = vector.broadcast %cst_28 : f32 to vector<8x1xf32>
      %c0_29 = arith.constant 0 : index
      %c0_30 = arith.constant 0 : index
      %38 = vector.load %arg6[%c0_29, %c0_30] : memref<8x1xf32, #tpu.memory_space<vmem>>, vector<8x1xf32>
      tpu.vector_store %arg6[%c0_29, %c0_30], %37 {strides = array<i32>} : memref<8x1xf32, #tpu.memory_space<vmem>>, vector<8x1xf32>,
      %cst_31 = arith.constant 0.000000e+00 : f32
      %39 = vector.broadcast %cst_31 : f32 to vector<8x1xf32>
      %c0_32 = arith.constant 0 : index
      %c0_33 = arith.constant 0 : index
      %40 = vector.load %arg7[%c0_32, %c0_33] : memref<8x1xf32, #tpu.memory_space<vmem>>, vector<8x1xf32>
      tpu.vector_store %arg7[%c0_32, %c0_33], %39 {strides = array<i32>} : memref<8x1xf32, #tpu.memory_space<vmem>>, vector<8x1xf32>,
      %cst_34 = arith.constant 0.000000e+00 : f32
      %41 = vector.broadcast %cst_34 : f32 to vector<8x1xf32>
      %c0_35 = arith.constant 0 : index
      %c0_36 = arith.constant 0 : index
      %42 = vector.load %arg8[%c0_35, %c0_36] : memref<8x1xf32, #tpu.memory_space<vmem>>, vector<8x1xf32>
      tpu.vector_store %arg8[%c0_35, %c0_36], %41 {strides = array<i32>} : memref<8x1xf32, #tpu.memory_space<vmem>>, vector<8x1xf32>,
    } else {
    }
    %c0 = arith.constant 0 : index
    %c0_1 = arith.constant 0 : index
    %3 = vector.load %arg2[%c0, %c0_1] : memref<8x32xf32, #tpu.memory_space<vmem>>, vector<8x32xf32>
    %c0_2 = arith.constant 0 : index
    %c0_3 = arith.constant 0 : index
    %4 = vector.load %arg3[%c0_2, %c0_3] : memref<8x32xf32, #tpu.memory_space<vmem>>, vector<8x32xf32>
    %c0_4 = arith.constant 0 : index
    %c0_5 = arith.constant 0 : index
    %5 = vector.load %arg5[%c0_4, %c0_5] : memref<8x1xf32, #tpu.memory_space<vmem>>, vector<8x1xf32>
    %cst = arith.constant dense<0xFF800000> : vector<8xf32>
    %6 = vector.multi_reduction <maximumf>, %3, %cst [1] : vector<8x32xf32> to vector<8xf32>
    %7 = vector.shape_cast %6 : vector<8xf32> to vector<8x1xf32>
    %8 = arith.maximumf %5, %7 : vector<8x1xf32>
    %9 = arith.subf %5, %8 : vector<8x1xf32>
    %10 = math.exp %9 : vector<8x1xf32>
    %c0_6 = arith.constant 0 : index
    %c0_7 = arith.constant 0 : index
    %11 = vector.load %arg6[%c0_6, %c0_7] : memref<8x1xf32, #tpu.memory_space<vmem>>, vector<8x1xf32>
    %12 = arith.mulf %10, %11 : vector<8x1xf32>
    %13 = vector.broadcast %8 : vector<8x1xf32> to vector<8x32xf32>
    %14 = arith.subf %3, %13 : vector<8x32xf32>
    %15 = math.exp %14 : vector<8x32xf32>
    %cst_8 = arith.constant dense<0.000000e+00> : vector<8xf32>
    %16 = vector.multi_reduction <add>, %15, %cst_8 [1] : vector<8x32xf32> to vector<8xf32>
    %17 = vector.shape_cast %16 : vector<8xf32> to vector<8x1xf32>
    %18 = arith.addf %12, %17 : vector<8x1xf32>
    %c0_9 = arith.constant 0 : index
    %c0_10 = arith.constant 0 : index
    %19 = vector.load %arg6[%c0_9, %c0_10] : memref<8x1xf32, #tpu.memory_space<vmem>>, vector<8x1xf32>
    tpu.vector_store %arg6[%c0_9, %c0_10], %18 {strides = array<i32>} : memref<8x1xf32, #tpu.memory_space<vmem>>, vector<8x1xf32>,
    %c0_11 = arith.constant 0 : index
    %c0_12 = arith.constant 0 : index
    %20 = vector.load %arg7[%c0_11, %c0_12] : memref<8x1xf32, #tpu.memory_space<vmem>>, vector<8x1xf32>
    %cst_13 = arith.constant dense<0.000000e+00> : vector<8xf32>
    %21 = vector.multi_reduction <add>, %4, %cst_13 [1] : vector<8x32xf32> to vector<8xf32>
    %22 = vector.shape_cast %21 : vector<8xf32> to vector<8x1xf32>
    %23 = arith.addf %20, %22 : vector<8x1xf32>
    %c0_14 = arith.constant 0 : index
    %c0_15 = arith.constant 0 : index
    %24 = vector.load %arg7[%c0_14, %c0_15] : memref<8x1xf32, #tpu.memory_space<vmem>>, vector<8x1xf32>
    tpu.vector_store %arg7[%c0_14, %c0_15], %23 {strides = array<i32>} : memref<8x1xf32, #tpu.memory_space<vmem>>, vector<8x1xf32>,
    %c0_16 = arith.constant 0 : index
    %c0_17 = arith.constant 0 : index
    %25 = vector.load %arg8[%c0_16, %c0_17] : memref<8x1xf32, #tpu.memory_space<vmem>>, vector<8x1xf32>
    %26 = arith.mulf %4, %3 : vector<8x32xf32>
    %cst_18 = arith.constant dense<0.000000e+00> : vector<8xf32>
    %27 = vector.multi_reduction <add>, %26, %cst_18 [1] : vector<8x32xf32> to vector<8xf32>
    %28 = vector.shape_cast %27 : vector<8xf32> to vector<8x1xf32>
    %29 = arith.addf %25, %28 : vector<8x1xf32>
    %c0_19 = arith.constant 0 : index
    %c0_20 = arith.constant 0 : index
    %30 = vector.load %arg8[%c0_19, %c0_20] : memref<8x1xf32, #tpu.memory_space<vmem>>, vector<8x1xf32>
    tpu.vector_store %arg8[%c0_19, %c0_20], %29 {strides = array<i32>} : memref<8x1xf32, #tpu.memory_space<vmem>>, vector<8x1xf32>,
    %c0_21 = arith.constant 0 : index
    %c0_22 = arith.constant 0 : index
    %31 = vector.load %arg5[%c0_21, %c0_22] : memref<8x1xf32, #tpu.memory_space<vmem>>, vector<8x1xf32>
    tpu.vector_store %arg5[%c0_21, %c0_22], %8 {strides = array<i32>} : memref<8x1xf32, #tpu.memory_space<vmem>>, vector<8x1xf32>,
    %c0_i32_23 = arith.constant 0 : i32
    %32 = arith.cmpi eq, %arg1, %c0_i32_23 : i32
    %33 = arith.extui %32 : i1 to i32
    %c0_i32_24 = arith.constant 0 : i32
    %34 = arith.cmpi ne, %33, %c0_i32_24 : i32
    scf.if %34 {
      %c0_25 = arith.constant 0 : index
      %c0_26 = arith.constant 0 : index
      %35 = vector.load %arg5[%c0_25, %c0_26] : memref<8x1xf32, #tpu.memory_space<vmem>>, vector<8x1xf32>
      %c0_27 = arith.constant 0 : index
      %c0_28 = arith.constant 0 : index
      %36 = vector.load %arg6[%c0_27, %c0_28] : memref<8x1xf32, #tpu.memory_space<vmem>>, vector<8x1xf32>
      %37 = math.log %36 : vector<8x1xf32>
      %38 = arith.addf %35, %37 : vector<8x1xf32>
      %c0_29 = arith.constant 0 : index
      %c0_30 = arith.constant 0 : index
      %39 = vector.load %arg7[%c0_29, %c0_30] : memref<8x1xf32, #tpu.memory_space<vmem>>, vector<8x1xf32>
      %40 = arith.mulf %38, %39 : vector<8x1xf32>
      %c0_31 = arith.constant 0 : index
      %c0_32 = arith.constant 0 : index
      %41 = vector.load %arg8[%c0_31, %c0_32] : memref<8x1xf32, #tpu.memory_space<vmem>>, vector<8x1xf32>
      %42 = arith.subf %40, %41 : vector<8x1xf32>
      %c0_33 = arith.constant 0 : index
      %c0_34 = arith.constant 0 : index
      %43 = vector.load %arg4[%c0_33, %c0_34] : memref<8x1xf32, #tpu.memory_space<vmem>>, vector<8x1xf32>
      tpu.vector_store %arg4[%c0_33, %c0_34], %42 {strides = array<i32>} : memref<8x1xf32, #tpu.memory_space<vmem>>, vector<8x1xf32>,
    } else {
    }
    return
  }
  func.func @transform_0(%arg0: i32, %arg1: i32) -> (i32, i32) {
    %c0_i32 = arith.constant 0 : i32
    return %arg0, %arg1 : i32, i32
  }
  func.func @transform_1(%arg0: i32, %arg1: i32) -> (i32, i32) {
    %c0_i32 = arith.constant 0 : i32
    return %arg0, %arg1 : i32, i32
  }
  func.func @transform_2(%arg0: i32, %arg1: i32) -> (i32, i32) {
    %c0_i32 = arith.constant 0 : i32
    %c0_i32_0 = arith.constant 0 : i32
    return %arg0, %c0_i32 : i32, i32
  }
}

</mosaic_0001>

<llo_original>
// kernel: tpu_custom_call.1
$region0: #{tpu_custom_call.1}
  #allocation0 [shape = 'u32[]', space=smem, size = 0x4, offset = 0x4, fixed_abs, tag = 'smem constant byte address 0x4 - core index']
  #allocation1 [shape = 'u32[144,128]{1,0:T(1,128)}', space=vmem, size = 0x12000, scoped, tag = 'internal scratch']
  #allocation2 [shape = 'f32[8,1]{1,0:T(8,128)}', space=vmem, size = 0x1000, scoped, tag = 'scratch operand']
  #allocation3 [shape = 'f32[8,1]{1,0:T(8,128)}', space=vmem, size = 0x1000, scoped, tag = 'scratch operand']
  #allocation4 [shape = 'f32[8,1]{1,0:T(8,128)}', space=vmem, size = 0x1000, scoped, tag = 'scratch operand']
  #allocation5 [shape = 'f32[8,1]{1,0:T(8,128)}', space=vmem, size = 0x1000, scoped, tag = 'scratch operand']
  %s0 = inlined_call_operand.hbm [shape: f32[8,32], index: 0, kind: input, shape index: {}]
  %s1 = inlined_call_operand.hbm [shape: f32[8,32], index: 1, kind: input, shape index: {}]
  %s2 = inlined_call_operand.vmem [shape: f32[8,1], index: 2, kind: output, shape index: {}]
  %s3 = sld [smem:[#allocation0]]
  $region34: #{tpu_custom_call.1} parent=0
    _
  %s5 = ssub.s32 1, %s3
  %s6 = scalar_select 0, %s5, %s3
  $region1: #{tpu_custom_call.1} parent=0
    #allocation6 [shape = 'u8[4096]{0}', space=vmem, size = 0x1000, scoped, tag = 'input window, operand 0, single buffered']
    #allocation7 [shape = 's32[1]{0}', space=sflag, size = 0x4, scoped, tag = 'scoped memory for tpu_custom_call.1']
    #allocation8 [shape = 'u8[4096]{0}', space=vmem, size = 0x1000, scoped, tag = 'input window, operand 1, single buffered']
    #allocation9 [shape = 's32[1]{0}', space=sflag, size = 0x4, scoped, tag = 'scoped memory for tpu_custom_call.1']
    %7 = vsyncpa [#allocation7], 0
    %8 = vsyncpa [#allocation9], 0
    // Predicated region
    $region2: #{tpu_custom_call.1} parent=1 // pred_check
      _
    $region3: #{tpu_custom_call.1} parent=1 // pred_check_branch
      %10 = sbr.rel (0) target = $region5
    $region4: #{tpu_custom_call.1} parent=1 // pred_region
      %s12 = ssub.s32 128, 128
      %13 = vsyncadd [#allocation7], %s12
      %s15 = sshll.u32 [#allocation6], 4
      %s16 = int_to_ptr.vmem [resolvable:$true] %s15
      %18 = dma.hbm_to_vmem [thread:$0]  %s0, 128, %s16, [#allocation7]
    $region5: #{tpu_custom_call.1} parent=1 // pred_fallthru
      _
    // Predicated region
    $region6: #{tpu_custom_call.1} parent=1 // pred_check
      _
    $region7: #{tpu_custom_call.1} parent=1 // pred_check_branch
      %20 = sbr.rel (0) target = $region9
    $region8: #{tpu_custom_call.1} parent=1 // pred_region
      %s22 = ssub.s32 128, 128
      %23 = vsyncadd [#allocation9], %s22
      %s25 = sshll.u32 [#allocation8], 4
      %s26 = int_to_ptr.vmem [resolvable:$true] %s25
      %28 = dma.hbm_to_vmem [thread:$0]  %s1, 128, %s26, [#allocation9]
    $region9: #{tpu_custom_call.1} parent=1 // pred_fallthru
      _
    // Predicated region
    $region10: #{tpu_custom_call.1} parent=1 // pred_check
      _
    $region11: #{tpu_custom_call.1} parent=1 // pred_check_branch
      %30 = sbr.rel (0) target = $region13
    $region12: #{tpu_custom_call.1} parent=1 // pred_region
      %31 = dma.done [#allocation7], 128
    $region13: #{tpu_custom_call.1} parent=1 // pred_fallthru
      _
    // Predicated region
    $region14: #{tpu_custom_call.1} parent=1 // pred_check
      _
    $region15: #{tpu_custom_call.1} parent=1 // pred_check_branch
      %33 = sbr.rel (0) target = $region17
    $region16: #{tpu_custom_call.1} parent=1 // pred_region
      %34 = dma.done [#allocation9], 128
    $region17: #{tpu_custom_call.1} parent=1 // pred_fallthru
      _
    %p35 = scmp.eq.s32.totalorder 0, 0
    // Predicated region
    $region18: #{tpu_custom_call.1} parent=1 // pred_check
      %p36 = pneg %p35
    $region19: #{tpu_custom_call.1} parent=1 // pred_check_branch
      %38 = sbr.rel (%p36) target = $region21
    $region20: #{tpu_custom_call.1} parent=1 // pred_region
      %vm39 = vcmask 7168
      %40 = vst.msk [vmem:[#allocation2] sm:$0xff] %vm39, -1e+30
      %41 = vst.msk [vmem:[#allocation3] sm:$0xff] %vm39, 0.0
      %42 = vst.msk [vmem:[#allocation4] sm:$0xff] %vm39, 0.0
      %43 = vst.msk [vmem:[#allocation5] sm:$0xff] %vm39, 0.0
    $region21: #{tpu_custom_call.1} parent=1 // pred_fallthru
      _
    %v44 = vld [vmem:[#allocation6] sm:$0xff]
    %v45 = vld [vmem:[#allocation8] sm:$0xff]
    %v46 = vld [vmem:[#allocation2] sm:$0xff]
    %vm47 = vcmask 261120
    %v48 = vsel %vm47, %v44, -inf
    %49 = vmax.xlane.f32.xlu0 %v48
    %v50 = vpop.xlane.xlu0 %49
    %v51 = vmax.f32 %v46, %v50
    %v52 = vsub.f32 %v46, %v51
    %v53 = vmul.f32 %v52, 1.442695
    %v54 = vpow.pop %v53
    %v55 = vld [vmem:[#allocation3] sm:$0xff]
    %v56 = vmul.f32 %v54, %v55
    %58 = vset.pattern.permute.xlu0 0
    %59 = vperm.xlu0 %58, %v51
    %v60 = vpop.permute.xlu0 %59
    %v62 = vsub.f32 %v44, %v60
    %v63 = vmul.f32 %v62, 1.442695
    %v64 = vpow.pop %v63
    %v65 = vsel %vm47, %v64, 0.0
    %66 = vadd.xlane.f32.xlu0 %v65
    %v67 = vpop.xlane.xlu0 %66
    %v68 = vadd.f32 %v56, %v67
    %vm69 = vcmask 7168
    %70 = vst.msk [vmem:[#allocation3] sm:$0xff] %vm69, %v68
    %v71 = vld [vmem:[#allocation4] sm:$0xff]
    %v72 = vsel %vm47, %v45, 0.0
    %73 = vadd.xlane.f32.xlu0 %v72
    %v74 = vpop.xlane.xlu0 %73
    %v75 = vadd.f32 %v71, %v74
    %76 = vst.msk [vmem:[#allocation4] sm:$0xff] %vm69, %v75
    %v77 = vld [vmem:[#allocation5] sm:$0xff]
    %v78 = vmul.f32 %v45, %v44
    %v79 = vsel %vm47, %v78, 0.0
    %80 = vadd.xlane.f32.xlu0 %v79
    %v81 = vpop.xlane.xlu0 %80
    %v82 = vadd.f32 %v77, %v81
    %83 = vst.msk [vmem:[#allocation5] sm:$0xff] %vm69, %v82
    %84 = vst.msk [vmem:[#allocation2] sm:$0xff] %vm69, %v51
    // Predicated region
    $region22: #{tpu_custom_call.1} parent=1 // pred_check
      %p85 = pneg %p35
    $region23: #{tpu_custom_call.1} parent=1 // pred_check_branch
      %87 = sbr.rel (%p85) target = $region25
    $region24: #{tpu_custom_call.1} parent=1 // pred_region
      %v88 = vld [vmem:[#allocation2] sm:$0xff]
      %v89 = vld [vmem:[#allocation3] sm:$0xff]
      %v90 = vlog2.pop %v89
      %v91 = vmul.f32 %v90, 0.6931472
      %v92 = vadd.f32 %v88, %v91
      %v93 = vld [vmem:[#allocation4] sm:$0xff]
      %v94 = vmul.f32 %v92, %v93
      %v95 = vld [vmem:[#allocation5] sm:$0xff]
      %v96 = vsub.f32 %v94, %v95
      %97 = vst.msk [vmem:[%s2] sm:$0xff] %vm69, %v96
    $region25: #{tpu_custom_call.1} parent=1 // pred_fallthru
      _
    // Predicated region
    $region26: #{tpu_custom_call.1} parent=1 // pred_check
      _
    $region27: #{tpu_custom_call.1} parent=1 // pred_check_branch
      %99 = sbr.rel (0) target = $region29
    $region28: #{tpu_custom_call.1} parent=1 // pred_region
      _
    $region29: #{tpu_custom_call.1} parent=1 // pred_fallthru
      _
    // Predicated region
    $region30: #{tpu_custom_call.1} parent=1 // pred_check
      _
    $region31: #{tpu_custom_call.1} parent=1 // pred_check_branch
      %101 = sbr.rel (0) target = $region33
    $region32: #{tpu_custom_call.1} parent=1 // pred_region
      _
    $region33: #{tpu_custom_call.1} parent=1 // pred_fallthru
      _
    %102 = vsyncpa [#allocation7], 1
    %103 = vsyncpa [#allocation9], 1

</llo_original>
